<compile_context>
chip_gen: v5e
topology: v5e:2x2
jax: 0.10.0
libtpu: 0.0.40
codegen_flags: <defaults>
</compile_context>

<pallas_src>
import functools
from math import sqrt

import numpy as np
import jax
import jax.numpy as jnp
from jax import lax
from jax.experimental import pallas as pl
from jax.experimental.pallas import tpu as pltpu


def _mlp_kernel(x_ref, w1_ref, b1_ref, w2_ref, b2_ref, w3_ref, b3_ref, o_ref,
                *, mm_dtype, act_dtype):
    """Full 3-layer MLP on one batch tile.

    x_ref:  (tile_b, in_dim)    native HBM layout (batch rows, feature lanes)
    wK_ref: (out_feat, in_feat) PyTorch nn.Linear storage layout, mm_dtype
    bK_ref: (out_feat, 1)       f32
    o_ref:  (out_dim, tile_b)   batch-on-lanes (lane-dense store)

    After layer 1 the batch lives on the lane axis.  Every op is
    per-batch-column (all contractions are over features only), so garbage
    rows in a partial last input block only corrupt output columns that
    Pallas never writes back to HBM.
    """
    x = x_ref[...].astype(mm_dtype)

    # Layer 1: contract feature axes of W1 (dim 1) and x (dim 1) -> (hid, tile_b).
    h = lax.dot_general(w1_ref[...], x,
                        dimension_numbers=(((1,), (1,)), ((), ())),
                        preferred_element_type=jnp.float32) + b1_ref[...]
    h = jnp.tanh(h.astype(act_dtype)).astype(mm_dtype)

    # Layer 2: (hid, hid) @ (hid, tile_b), f32 accumulation.
    h = jnp.dot(w2_ref[...], h, preferred_element_type=jnp.float32) + b2_ref[...]
    h = jnp.tanh(h.astype(act_dtype)).astype(mm_dtype)

    # Layer 3: (out, hid) @ (hid, tile_b).
    out = jnp.dot(w3_ref[...], h, preferred_element_type=jnp.float32) + b3_ref[...]
    o_ref[...] = out.astype(o_ref.dtype)


@functools.lru_cache(maxsize=1)
def _bf16_elementwise_default():
    """bf16 VPU/EUP exists on v6e/v7x only; keep elementwise f32 elsewhere."""
    try:
        kind = jax.devices()[0].device_kind.lower()
    except Exception:
        return False
    return ("v6" in kind) or ("v7" in kind)


def _pick_tile(batch, tile_b):
    """Return (tile width, grid steps).

    Batch tiles are multiples of 128 lanes.  When the step count would be odd
    (>1), shrink the tile a little (never below tile_b/2) to get an even count
    so v7x's two TensorCores stay balanced along the "parallel" grid axis.
    """
    if batch <= tile_b:
        return batch, 1
    tb = max(128, (int(tile_b) // 128) * 128)
    steps = pl.cdiv(batch, tb)
    if steps > 1 and steps % 2 == 1:
        cand = tb - 128
        while cand >= max(128, tb // 2):
            s = pl.cdiv(batch, cand)
            if s % 2 == 0:
                return cand, s
            cand -= 128
    return tb, steps


@functools.partial(
    jax.jit,
    static_argnames=("tile_b", "use_bf16_matmul", "bf16_elementwise", "out_dtype"))
def _forward_impl(x, w1, b1, w2, b2, w3, b3, *, tile_b, use_bf16_matmul,
                  bf16_elementwise, out_dtype):
    B, in_dim = x.shape
    hid = w1.shape[0]
    out_dim = w3.shape[0]

    mm_dtype = jnp.bfloat16 if use_bf16_matmul else jnp.float32
    act_dtype = (jnp.bfloat16
                 if (use_bf16_matmul and bf16_elementwise) else jnp.float32)

    # Weights/biases are ~6 KB total; casting/reshaping them here is free.
    w1c, w2c, w3c = (w.astype(mm_dtype) for w in (w1, w2, w3))
    b1c = b1.reshape(hid, 1).astype(jnp.float32)
    b2c = b2.reshape(hid, 1).astype(jnp.float32)
    b3c = b3.reshape(out_dim, 1).astype(jnp.float32)

    tb, steps = _pick_tile(B, int(tile_b))

    kernel = functools.partial(_mlp_kernel, mm_dtype=mm_dtype, act_dtype=act_dtype)

    rep = lambda i: (0, 0)   # weights/biases replicated across the batch grid

    # Raise the scoped VMEM limit only if a very large tile actually needs it
    # (default scoped limit 16/32/32 MiB on v5e/v6e/v7x is hit before physical).
    isz = lambda dt: np.dtype(dt).itemsize
    est_vmem = (2 * tb * in_dim * isz(x.dtype)        # double-buffered x tiles
                + 2 * out_dim * tb * isz(out_dtype)   # double-buffered out tiles
                + 6 * hid * tb * 4                    # f32/bf16 intermediates
                + (1 << 20))                          # weights + slack
    cparams = {"dimension_semantics": ("parallel",)}
    if est_vmem > (16 << 20):
        cparams["vmem_limit_bytes"] = int(min(2 * est_vmem, 100 << 20))

    out_t = pl.pallas_call(
        kernel,
        out_shape=jax.ShapeDtypeStruct((out_dim, B), out_dtype),
        grid_spec=pl.GridSpec(
            grid=(steps,),
            in_specs=[
                pl.BlockSpec((tb, in_dim), lambda i: (i, 0)),   # x tile (native)
                pl.BlockSpec((hid, in_dim), rep),               # W1
                pl.BlockSpec((hid, 1), rep),                    # b1
                pl.BlockSpec((hid, hid), rep),                  # W2
                pl.BlockSpec((hid, 1), rep),                    # b2
                pl.BlockSpec((out_dim, hid), rep),              # W3
                pl.BlockSpec((out_dim, 1), rep),                # b3
            ],
            out_specs=pl.BlockSpec((out_dim, tb), lambda i: (0, i)),
        ),
        compiler_params=pltpu.CompilerParams(**cparams),
    )(x, w1c, b1c, w2c, b2c, w3c, b3c)

    # (out_dim, B) -> (B, out_dim); transpose of a 4-row array is negligible.
    return out_t.T


def neural_net_forward(x, w1, b1, w2, b2, w3, b3, *, tile_b=4096,
                       use_bf16_matmul=True, bf16_elementwise=None,
                       out_dtype=None):
    """Forward pass matching torch: x @ W.T + b per layer, tanh between layers.

    Weights are in PyTorch nn.Linear layout (out_features, in_features).
    Returns (B, num_classes) in `out_dtype` (default: x.dtype).
    """
    if bf16_elementwise is None:
        bf16_elementwise = bool(use_bf16_matmul) and _bf16_elementwise_default()
    if out_dtype is None:
        out_dtype = x.dtype
    return _forward_impl(x, w1, b1, w2, b2, w3, b3,
                         tile_b=int(tile_b),
                         use_bf16_matmul=bool(use_bf16_matmul),
                         bf16_elementwise=bool(bf16_elementwise),
                         out_dtype=np.dtype(out_dtype))


def init_params(key, input_size, hidden_size, num_classes, dtype=jnp.float32):
    """torch.nn.Linear-style init: U[-1/sqrt(fan_in), 1/sqrt(fan_in)].

    Weights are stored in PyTorch layout (out_features, in_features).
    """
    ks = jax.random.split(key, 6)

    def linear(kw, kb, fan_in, fan_out):
        bound = 1.0 / sqrt(fan_in)
        w = jax.random.uniform(kw, (fan_out, fan_in), dtype, -bound, bound)
        b = jax.random.uniform(kb, (fan_out,), dtype, -bound, bound)
        return w, b

    w1, b1 = linear(ks[0], ks[1], input_size, hidden_size)
    w2, b2 = linear(ks[2], ks[3], hidden_size, hidden_size)
    w3, b3 = linear(ks[4], ks[5], hidden_size, num_classes)
    return w1, b1, w2, b2, w3, b3


def reference_forward(x, w1, b1, w2, b2, w3, b3):
    h1 = jnp.tanh(x @ w1.T + b1)
    h2 = jnp.tanh(h1 @ w2.T + b2)
    return h2 @ w3.T + b3


if __name__ == "__main__":
    # Shapes consistent with the module: input=16, hidden=32, classes=4.
    B, input_size, hidden_size, num_classes = 16, 16, 32, 4

    key = jax.random.PRNGKey(0)
    k_x, k_p, k_x2 = jax.random.split(key, 3)

    params = init_params(k_p, input_size, hidden_size, num_classes)

    # --- small batch: single grid step, full arrays as VMEM blocks ---
    x_small = jax.random.normal(k_x, (B, input_size), jnp.float32)
    ref_small = reference_forward(x_small, *params)

    out_small_f32 = jax.block_until_ready(
        neural_net_forward(x_small, *params, use_bf16_matmul=False))
    assert out_small_f32.shape == (B, num_classes), out_small_f32.shape
    assert jnp.allclose(out_small_f32, ref_small, atol=1e-4, rtol=1e-4), \
        "small-batch f32 mismatch vs JAX reference"

    out_small = jax.block_until_ready(neural_net_forward(x_small, *params))
    assert jnp.allclose(out_small, ref_small, atol=5e-2, rtol=1e-1), \
        "small-batch bf16 path deviates too much from f32 reference"

    # --- large ragged batch: lane-dense tiles, partial last block (no pad) ---
    B2 = 4500   # with tile_b=2048: odd step count -> exercises even-step tweak
    x_big = jax.random.normal(k_x2, (B2, input_size), jnp.float32)
    ref_big = reference_forward(x_big, *params)

    out_big_f32 = jax.block_until_ready(
        neural_net_forward(x_big, *params, tile_b=2048, use_bf16_matmul=False))
    assert out_big_f32.shape == (B2, num_classes), out_big_f32.shape
    assert jnp.allclose(out_big_f32, ref_big, atol=1e-4, rtol=1e-4), \
        "large-batch f32 mismatch vs JAX reference"

    out_big = jax.block_until_ready(
        neural_net_forward(x_big, *params, tile_b=2048))
    assert jnp.allclose(out_big, ref_big, atol=5e-2, rtol=1e-1), \
        "large-batch bf16 path deviates too much from f32 reference"

    # --- default path (tile_b=4096 -> 2 even steps, ragged tail) ---
    out_default = jax.block_until_ready(neural_net_forward(x_big, *params))
    assert out_default.shape == (B2, num_classes), out_default.shape
    assert jnp.allclose(out_default, ref_big, atol=5e-2, rtol=1e-1), \
        "default-path mismatch vs f32 reference"

    print("KERNEL_OK")
</pallas_src>

<mosaic_0001>
module attributes {stable_mosaic.version = 11 : i64} {
  func.func @_mlp_kernel(%arg0: i32, %arg1: memref<16x16xf32, #tpu.memory_space<vmem>>, %arg2: memref<32x16xf32, #tpu.memory_space<vmem>>, %arg3: memref<32x1xf32, #tpu.memory_space<vmem>>, %arg4: memref<32x32xf32, #tpu.memory_space<vmem>>, %arg5: memref<32x1xf32, #tpu.memory_space<vmem>>, %arg6: memref<4x32xf32, #tpu.memory_space<vmem>>, %arg7: memref<4x1xf32, #tpu.memory_space<vmem>>, %arg8: memref<4x16xf32, #tpu.memory_space<vmem>>) attributes {dimension_semantics = [#tpu.dimension_semantics<parallel>], iteration_bounds = array<i64: 1>, scalar_prefetch = 0 : i64, scratch_operands = 0 : i64, tpu.core_type = #tpu.core_type<tc>, window_params = [{transform_indices = @transform_0, window_bounds = array<i64: 16, 16>}, {pipeline_mode = #tpu.pipeline_mode<synchronous>, transform_indices = @transform_1, window_bounds = array<i64: 32, 16>}, {pipeline_mode = #tpu.pipeline_mode<synchronous>, transform_indices = @transform_2, window_bounds = array<i64: 32, 1>}, {pipeline_mode = #tpu.pipeline_mode<synchronous>, transform_indices = @transform_3, window_bounds = array<i64: 32, 32>}, {pipeline_mode = #tpu.pipeline_mode<synchronous>, transform_indices = @transform_4, window_bounds = array<i64: 32, 1>}, {pipeline_mode = #tpu.pipeline_mode<synchronous>, transform_indices = @transform_5, window_bounds = array<i64: 4, 32>}, {pipeline_mode = #tpu.pipeline_mode<synchronous>, transform_indices = @transform_6, window_bounds = array<i64: 4, 1>}, {transform_indices = @transform_7, window_bounds = array<i64: 4, 16>}]} {
    %c0 = arith.constant 0 : index
    %c0_0 = arith.constant 0 : index
    %0 = vector.load %arg1[%c0, %c0_0] : memref<16x16xf32, #tpu.memory_space<vmem>>, vector<16x16xf32>
    %c0_1 = arith.constant 0 : index
    %c0_2 = arith.constant 0 : index
    %1 = vector.load %arg2[%c0_1, %c0_2] : memref<32x16xf32, #tpu.memory_space<vmem>>, vector<32x16xf32>
    %cst = arith.constant dense<0.000000e+00> : vector<32x16xf32>
    %2 = tpu.matmul %1, %0, %cst {dimension_numbers = #tpu.dot_dimension_numbers<[1], [1], [0], [0], [0, 0, 1, 0], [], []>} : vector<32x16xf32>, vector<16x16xf32>, vector<32x16xf32> -> vector<32x16xf32>
    %c0_3 = arith.constant 0 : index
    %c0_4 = arith.constant 0 : index
    %3 = vector.load %arg3[%c0_3, %c0_4] : memref<32x1xf32, #tpu.memory_space<vmem>>, vector<32x1xf32>
    %4 = vector.broadcast %3 : vector<32x1xf32> to vector<32x16xf32>
    %5 = arith.addf %2, %4 : vector<32x16xf32>
    %6 = math.tanh %5 : vector<32x16xf32>
    %c0_5 = arith.constant 0 : index
    %c0_6 = arith.constant 0 : index
    %7 = vector.load %arg4[%c0_5, %c0_6] : memref<32x32xf32, #tpu.memory_space<vmem>>, vector<32x32xf32>
    %cst_7 = arith.constant dense<0.000000e+00> : vector<32x16xf32>
    %8 = tpu.matmul %7, %6, %cst_7 {dimension_numbers = #tpu.dot_dimension_numbers<[1], [0], [0], [1], [0, 0, 1, 1], [], []>} : vector<32x32xf32>, vector<32x16xf32>, vector<32x16xf32> -> vector<32x16xf32>
    %c0_8 = arith.constant 0 : index
    %c0_9 = arith.constant 0 : index
    %9 = vector.load %arg5[%c0_8, %c0_9] : memref<32x1xf32, #tpu.memory_space<vmem>>, vector<32x1xf32>
    %10 = vector.broadcast %9 : vector<32x1xf32> to vector<32x16xf32>
    %11 = arith.addf %8, %10 : vector<32x16xf32>
    %12 = math.tanh %11 : vector<32x16xf32>
    %c0_10 = arith.constant 0 : index
    %c0_11 = arith.constant 0 : index
    %13 = vector.load %arg6[%c0_10, %c0_11] : memref<4x32xf32, #tpu.memory_space<vmem>>, vector<4x32xf32>
    %cst_12 = arith.constant dense<0.000000e+00> : vector<4x16xf32>
    %14 = tpu.matmul %13, %12, %cst_12 {dimension_numbers = #tpu.dot_dimension_numbers<[1], [0], [0], [1], [0, 0, 1, 1], [], []>} : vector<4x32xf32>, vector<32x16xf32>, vector<4x16xf32> -> vector<4x16xf32>
    %c0_13 = arith.constant 0 : index
    %c0_14 = arith.constant 0 : index
    %15 = vector.load %arg7[%c0_13, %c0_14] : memref<4x1xf32, #tpu.memory_space<vmem>>, vector<4x1xf32>
    %16 = vector.broadcast %15 : vector<4x1xf32> to vector<4x16xf32>
    %17 = arith.addf %14, %16 : vector<4x16xf32>
    %c0_15 = arith.constant 0 : index
    %c0_16 = arith.constant 0 : index
    %18 = vector.load %arg8[%c0_15, %c0_16] : memref<4x16xf32, #tpu.memory_space<vmem>>, vector<4x16xf32>
    tpu.vector_store %arg8[%c0_15, %c0_16], %17 {strides = array<i32>} : memref<4x16xf32, #tpu.memory_space<vmem>>, vector<4x16xf32>,
    return
  }
  func.func @transform_0(%arg0: i32) -> (i32, i32) {
    %c0_i32 = arith.constant 0 : i32
    %c0_i32_0 = arith.constant 0 : i32
    return %arg0, %c0_i32 : i32, i32
  }
  func.func @transform_1(%arg0: i32) -> (i32, i32) {
    %c0_i32 = arith.constant 0 : i32
    %c0_i32_0 = arith.constant 0 : i32
    %c0_i32_1 = arith.constant 0 : i32
    return %c0_i32, %c0_i32_0 : i32, i32
  }
  func.func @transform_2(%arg0: i32) -> (i32, i32) {
    %c0_i32 = arith.constant 0 : i32
    %c0_i32_0 = arith.constant 0 : i32
    %c0_i32_1 = arith.constant 0 : i32
    return %c0_i32, %c0_i32_0 : i32, i32
  }
  func.func @transform_3(%arg0: i32) -> (i32, i32) {
    %c0_i32 = arith.constant 0 : i32
    %c0_i32_0 = arith.constant 0 : i32
    %c0_i32_1 = arith.constant 0 : i32
    return %c0_i32, %c0_i32_0 : i32, i32
  }
  func.func @transform_4(%arg0: i32) -> (i32, i32) {
    %c0_i32 = arith.constant 0 : i32
    %c0_i32_0 = arith.constant 0 : i32
    %c0_i32_1 = arith.constant 0 : i32
    return %c0_i32, %c0_i32_0 : i32, i32
  }
  func.func @transform_5(%arg0: i32) -> (i32, i32) {
    %c0_i32 = arith.constant 0 : i32
    %c0_i32_0 = arith.constant 0 : i32
    %c0_i32_1 = arith.constant 0 : i32
    return %c0_i32, %c0_i32_0 : i32, i32
  }
  func.func @transform_6(%arg0: i32) -> (i32, i32) {
    %c0_i32 = arith.constant 0 : i32
    %c0_i32_0 = arith.constant 0 : i32
    %c0_i32_1 = arith.constant 0 : i32
    return %c0_i32, %c0_i32_0 : i32, i32
  }
  func.func @transform_7(%arg0: i32) -> (i32, i32) {
    %c0_i32 = arith.constant 0 : i32
    %c0_i32_0 = arith.constant 0 : i32
    return %c0_i32, %arg0 : i32, i32
  }
}

</mosaic_0001>

<llo_original>
// kernel: _forward_impl.1
$region0: #{_forward_impl.1}
  #allocation0 [shape = 'u32[]', space=smem, size = 0x4, offset = 0x4, fixed_abs, tag = 'smem constant byte address 0x4 - core index']
  #allocation1 [shape = 'u32[72,128]{1,0:T(1,128)}', space=vmem, size = 0x9000, scoped, tag = 'internal scratch']
  %s0 = inlined_call_operand.vmem [shape: f32[16,16], index: 0, kind: input, shape index: {}]
  %s1 = inlined_call_operand.vmem [shape: f32[32,16], index: 1, kind: input, shape index: {}]
  %s2 = inlined_call_operand.vmem [shape: f32[32,1], index: 2, kind: input, shape index: {}]
  %s3 = inlined_call_operand.vmem [shape: f32[32,32], index: 3, kind: input, shape index: {}]
  %s4 = inlined_call_operand.vmem [shape: f32[32,1], index: 4, kind: input, shape index: {}]
  %s5 = inlined_call_operand.vmem [shape: f32[4,32], index: 5, kind: input, shape index: {}]
  %s6 = inlined_call_operand.vmem [shape: f32[4,1], index: 6, kind: input, shape index: {}]
  %s7 = inlined_call_operand.hbm [shape: f32[4,16], index: 7, kind: output, shape index: {}]
  %s8 = sld [smem:[#allocation0]]
  $region38: #{_forward_impl.1} parent=0
    _
  %s10 = ssub.s32 1, %s8
  %s11 = scalar_select 0, %s10, %s8
  $region1: #{_forward_impl.1} parent=0
    #allocation2 [shape = 'u8[2048]{0}', space=vmem, size = 0x800, scoped, tag = 'output window, operand 0, single buffered']
    #allocation3 [shape = 's32[1]{0}', space=sflag, size = 0x4, scoped, tag = 'scoped memory for _forward_impl.1']
    %12 = vsyncpa [#allocation3], 0
    // Predicated region
    $region2: #{_forward_impl.1} parent=1 // pred_check
      _
    $region3: #{_forward_impl.1} parent=1 // pred_check_branch
      %14 = sbr.rel (0) target = $region5
    $region4: #{_forward_impl.1} parent=1 // pred_region
      _
    $region5: #{_forward_impl.1} parent=1 // pred_fallthru
      _
    // Predicated region
    $region6: #{_forward_impl.1} parent=1 // pred_check
      _
    $region7: #{_forward_impl.1} parent=1 // pred_check_branch
      %16 = sbr.rel (0) target = $region9
    $region8: #{_forward_impl.1} parent=1 // pred_region
      _
    $region9: #{_forward_impl.1} parent=1 // pred_fallthru
      _
    // Predicated region
    $region10: #{_forward_impl.1} parent=1 // pred_check
      _
    $region11: #{_forward_impl.1} parent=1 // pred_check_branch
      %18 = sbr.rel (0) target = $region13
    $region12: #{_forward_impl.1} parent=1 // pred_region
      _
    $region13: #{_forward_impl.1} parent=1 // pred_fallthru
      _
    // Predicated region
    $region14: #{_forward_impl.1} parent=1 // pred_check
      _
    $region15: #{_forward_impl.1} parent=1 // pred_check_branch
      %20 = sbr.rel (0) target = $region17
    $region16: #{_forward_impl.1} parent=1 // pred_region
      _
    $region17: #{_forward_impl.1} parent=1 // pred_fallthru
      _
    // Predicated region
    $region18: #{_forward_impl.1} parent=1 // pred_check
      _
    $region19: #{_forward_impl.1} parent=1 // pred_check_branch
      %22 = sbr.rel (0) target = $region21
    $region20: #{_forward_impl.1} parent=1 // pred_region
      _
    $region21: #{_forward_impl.1} parent=1 // pred_fallthru
      _
    // Predicated region
    $region22: #{_forward_impl.1} parent=1 // pred_check
      _
    $region23: #{_forward_impl.1} parent=1 // pred_check_branch
      %24 = sbr.rel (0) target = $region25
    $region24: #{_forward_impl.1} parent=1 // pred_region
      _
    $region25: #{_forward_impl.1} parent=1 // pred_fallthru
      _
    // Predicated region
    $region26: #{_forward_impl.1} parent=1 // pred_check
      _
    $region27: #{_forward_impl.1} parent=1 // pred_check_branch
      %26 = sbr.rel (0) target = $region29
    $region28: #{_forward_impl.1} parent=1 // pred_region
      _
    $region29: #{_forward_impl.1} parent=1 // pred_fallthru
      _
    %v27 = vld [vmem:[%s0] sm:$0xff]
    %v28 = vld [vmem:[%s0 + $0x8] sm:$0xff]
    %v29 = vld [vmem:[%s1] sm:$0xff]
    %v30 = vld [vmem:[%s1 + $0x8] sm:$0xff]
    %v31 = vld [vmem:[%s1 + $0x10] sm:$0xff]
    %v32 = vld [vmem:[%s1 + $0x18] sm:$0xff]
    %v33 = vld [vmem:[%s2] sm:$0xff]
    %v34 = vld [vmem:[%s2 + $0x8] sm:$0xff]
    %v35 = vld [vmem:[%s2 + $0x10] sm:$0xff]
    %v36 = vld [vmem:[%s2 + $0x18] sm:$0xff]
    %38 = vset.pattern.permute.xlu0 0
    %39 = vperm.xlu0 %38, %v33
    %v40 = vpop.permute.xlu0 %39
    %43 = vset.pattern.permute.xlu0 0
    %44 = vperm.xlu0 %43, %v34
    %v45 = vpop.permute.xlu0 %44
    %48 = vset.pattern.permute.xlu0 0
    %49 = vperm.xlu0 %48, %v35
    %v50 = vpop.permute.xlu0 %49
    %53 = vset.pattern.permute.xlu0 0
    %54 = vperm.xlu0 %53, %v36
    %v55 = vpop.permute.xlu0 %54
    %vm57 = vcmask 130048
    %v59 = vsel %vm57, %v29, 0
    %v62 = vsel %vm57, %v30, 0
    %v65 = vsel %vm57, %v31, 0
    %v68 = vsel %vm57, %v32, 0
    %v71 = vsel %vm57, %v27, 0
    %v74 = vsel %vm57, %v28, 0
    %76 = vmatpush.xpose.msra.mxu0 0.0
    %77 = vmatpush.xpose.msra.mxu0 0.0
    %78 = vmatpush.xpose.msra.mxu0 0.0
    %79 = vmatpush.xpose.msra.mxu0 0.0
    %80 = vmatpush.xpose.msra.mxu0 0.0
    %81 = vmatpush.xpose.msra.mxu0 0.0
    %82 = vmatpush.xpose.msra.mxu0 0.0
    %83 = vmatpush.xpose.msra.mxu0 0.0
    %84 = vmatpush.xpose.msra.mxu0 0.0
    %85 = vmatpush.xpose.msra.mxu0 0.0
    %86 = vmatpush.xpose.msra.mxu0 0.0
    %87 = vmatpush.xpose.msra.mxu0 0.0
    %88 = vmatpush.xpose.msra.mxu0 0.0
    %89 = vmatpush.xpose.msra.mxu0 0.0
    %90 = vmatpush.xpose.msra.mxu0 %v74
    %91 = vmatpush.xpose.msra.mxu0 %v71
    %92 = vmatmul.f32.gmra.mxu0 %v59
    %v93 = vpop.f32.mrf.mxu0
    %v94 = vadd.f32 %v40, %v93
    %95 = vmatmul.f32.gmra.mxu0 %v62
    %v96 = vpop.f32.mrf.mxu0
    %v97 = vadd.f32 %v45, %v96
    %98 = vmatmul.f32.gmra.mxu0 %v65
    %v99 = vpop.f32.mrf.mxu0
    %v100 = vadd.f32 %v50, %v99
    %101 = vmatmul.f32.gmra.mxu0 %v68
    %v102 = vpop.f32.mrf.mxu0
    %v103 = vadd.f32 %v55, %v102
    %104 = vdwg.mxu0
    %v105 = vtanh.pop %v94
    %v106 = vtanh.pop %v97
    %v107 = vtanh.pop %v100
    %v108 = vtanh.pop %v103
    %v109 = vld [vmem:[%s3] sm:$0xff]
    %v110 = vld [vmem:[%s3 + $0x8] sm:$0xff]
    %v111 = vld [vmem:[%s3 + $0x10] sm:$0xff]
    %v112 = vld [vmem:[%s3 + $0x18] sm:$0xff]
    %v113 = vld [vmem:[%s4] sm:$0xff]
    %v114 = vld [vmem:[%s4 + $0x8] sm:$0xff]
    %v115 = vld [vmem:[%s4 + $0x10] sm:$0xff]
    %v116 = vld [vmem:[%s4 + $0x18] sm:$0xff]
    %118 = vset.pattern.permute.xlu0 0
    %119 = vperm.xlu0 %118, %v113
    %v120 = vpop.permute.xlu0 %119
    %123 = vset.pattern.permute.xlu0 0
    %124 = vperm.xlu0 %123, %v114
    %v125 = vpop.permute.xlu0 %124
    %128 = vset.pattern.permute.xlu0 0
    %129 = vperm.xlu0 %128, %v115
    %v130 = vpop.permute.xlu0 %129
    %133 = vset.pattern.permute.xlu0 0
    %134 = vperm.xlu0 %133, %v116
    %v135 = vpop.permute.xlu0 %134
    %vm137 = vcmask 261120
    %v139 = vsel %vm137, %v109, 0
    %v142 = vsel %vm137, %v110, 0
    %v145 = vsel %vm137, %v111, 0
    %v148 = vsel %vm137, %v112, 0
    %150 = vmatpush.msra.mxu0 0.0
    %151 = vmatpush.msra.mxu0 0.0
    %152 = vmatpush.msra.mxu0 0.0
    %153 = vmatpush.msra.mxu0 0.0
    %154 = vmatpush.msra.mxu0 0.0
    %155 = vmatpush.msra.mxu0 0.0
    %156 = vmatpush.msra.mxu0 0.0
    %157 = vmatpush.msra.mxu0 0.0
    %158 = vmatpush.msra.mxu0 0.0
    %159 = vmatpush.msra.mxu0 0.0
    %160 = vmatpush.msra.mxu0 0.0
    %161 = vmatpush.msra.mxu0 0.0
    %162 = vmatpush.msra.mxu0 %v108
    %163 = vmatpush.msra.mxu0 %v107
    %164 = vmatpush.msra.mxu0 %v106
    %165 = vmatpush.msra.mxu0 %v105
    %166 = vmatmul.f32.gmra.mxu0 %v139
    %v167 = vpop.f32.mrf.mxu0
    %v168 = vadd.f32 %v120, %v167
    %169 = vmatmul.f32.gmra.mxu0 %v142
    %v170 = vpop.f32.mrf.mxu0
    %v171 = vadd.f32 %v125, %v170
    %172 = vmatmul.f32.gmra.mxu0 %v145
    %v173 = vpop.f32.mrf.mxu0
    %v174 = vadd.f32 %v130, %v173
    %175 = vmatmul.f32.gmra.mxu0 %v148
    %v176 = vpop.f32.mrf.mxu0
    %v177 = vadd.f32 %v135, %v176
    %178 = vdwg.mxu0
    %v179 = vtanh.pop %v168
    %v180 = vtanh.pop %v171
    %v181 = vtanh.pop %v174
    %v182 = vtanh.pop %v177
    %v183 = vld [vmem:[%s5] sm:$0xf]
    %v184 = vld [vmem:[%s6] sm:$0xf]
    %186 = vset.pattern.permute.xlu0 0
    %187 = vperm.xlu0 %186, %v184
    %v188 = vpop.permute.xlu0 %187
    %v191 = vsel %vm137, %v183, 0
    %193 = vmatpush.msra.mxu0 0.0
    %194 = vmatpush.msra.mxu0 0.0
    %195 = vmatpush.msra.mxu0 0.0
    %196 = vmatpush.msra.mxu0 0.0
    %197 = vmatpush.msra.mxu0 0.0
    %198 = vmatpush.msra.mxu0 0.0
    %199 = vmatpush.msra.mxu0 0.0
    %200 = vmatpush.msra.mxu0 0.0
    %201 = vmatpush.msra.mxu0 0.0
    %202 = vmatpush.msra.mxu0 0.0
    %203 = vmatpush.msra.mxu0 0.0
    %204 = vmatpush.msra.mxu0 0.0
    %205 = vmatpush.msra.mxu0 %v182
    %206 = vmatpush.msra.mxu0 %v181
    %207 = vmatpush.msra.mxu0 %v180
    %208 = vmatpush.msra.mxu0 %v179
    %209 = vmatmul.f32.gmra.mxu0 %v191
    %v210 = vpop.f32.mrf.mxu0
    %v211 = vadd.f32 %v188, %v210
    %212 = vdwg.mxu0
    %vm213 = vcmask 125952
    %214 = vst.msk [vmem:[#allocation2] sm:$0xf] %vm213, %v211
    // Predicated region
    $region30: #{_forward_impl.1} parent=1 // pred_check
      _
    $region31: #{_forward_impl.1} parent=1 // pred_check_branch
      %216 = sbr.rel (0) target = $region33
    $region32: #{_forward_impl.1} parent=1 // pred_region
      %218 = vsyncadd [#allocation3], 0
      %s220 = sshll.u32 [#allocation2], 4
      %s221 = int_to_ptr.vmem [resolvable:$true] %s220
      %s222 = sshll.u32 %s7, 4
      %s223 = int_to_ptr.hbm [resolvable:$true] %s222
      %225 = dma.vmem_to_hbm [thread:$0]  %s221, 64, %s223, [#allocation3]
    $region33: #{_forward_impl.1} parent=1 // pred_fallthru
      _
    // Predicated region
    $region34: #{_forward_impl.1} parent=1 // pred_check
      _
    $region35: #{_forward_impl.1} parent=1 // pred_check_branch
      %227 = sbr.rel (0) target = $region37
    $region36: #{_forward_impl.1} parent=1 // pred_region
      %229 = dma.done [#allocation3], 64
    $region37: #{_forward_impl.1} parent=1 // pred_fallthru
      _
    %230 = vsyncpa [#allocation3], 1

</llo_original>
